<compile_context>
chip_gen: v5e
topology: v5e:2x2
jax: 0.10.0
libtpu: 0.0.40
codegen_flags: <defaults>
</compile_context>

<pallas_src>
import math
import jax
import jax.numpy as jnp
from jax.experimental import pallas as pl
from jax.experimental.pallas import tpu as pltpu


def _round_up(x, m):
    return ((x + m - 1) // m) * m


def _sigmoid_f32(x):
    # sigmoid(x) == 0.5 * (tanh(x/2) + 1): one EUP op per element instead of
    # exp + reciprocal.  Mathematically identical; evaluated in f32.
    return 0.5 * jnp.tanh(0.5 * x) + 0.5


def mlp_kernel(x_ref, w1_ref, b1_ref, w2_ref, b2_ref, w3_ref, b3_ref, o_ref):
    """Full MLP on one batch tile, batch-on-lanes orientation.

    x_ref: (tile_b, D)         -- compute dtype (bf16 by default)
    w*_ref: (out, in)          -- compute dtype, resident in VMEM
    b*_ref: (out, 1)           -- f32, resident in VMEM
    o_ref:  (1, tile_b)        -- f32, lane-dense output tile
    """
    # One small transpose so the batch dimension lives on lanes from here on.
    # (XLU slot is idle in this kernel, so this is effectively free.)
    xT = x_ref[...].T                                        # (D, tile_b)

    # Layer 1: (h1, D) @ (D, tile_b) -> (h1, tile_b), f32 accumulation.
    h = jnp.dot(w1_ref[...], xT, preferred_element_type=jnp.float32)
    h = _sigmoid_f32(h + b1_ref[...])                        # f32 sigmoid (v5e-safe)
    h = h.astype(w2_ref.dtype)                               # back to bf16 for MXU

    # Layer 2: (h2, h1) @ (h1, tile_b) -> (h2, tile_b).
    h = jnp.dot(w2_ref[...], h, preferred_element_type=jnp.float32)
    h = _sigmoid_f32(h + b2_ref[...])
    h = h.astype(w3_ref.dtype)

    # Head: (1, h2) @ (h2, tile_b) -> (1, tile_b), already lane-dense.
    out = jnp.dot(w3_ref[...], h, preferred_element_type=jnp.float32)
    o_ref[...] = (out + b3_ref[...]).astype(o_ref.dtype)


def dyad_ranking_forward(x, params, *, tile_b=8192, compute_dtype=jnp.bfloat16):
    """Pallas forward pass.

    x: (B, input_dim) array.  params: [(W1,b1),(W2,b2),(W3,b3)] in PyTorch
    nn.Linear layout (W: (out,in), b: (out,)).  Returns (B, 1) float32 scores.

    For best HBM efficiency pass x (and weights) already in bf16; the wrapper
    casts otherwise.  Set compute_dtype=jnp.float32 for exact validation.
    """
    B, D = x.shape
    (w1, b1), (w2, b2), (w3, b3) = params
    h1, h2 = w1.shape[0], w2.shape[0]
    assert w1.shape == (h1, D) and w2.shape == (h2, h1) and w3.shape == (1, h2)

    # Batch tile: keep it a multiple of 128 (lane-dense output, full vregs),
    # capped so tiny batches don't over-pad.  Default 8192 rows -> per-step
    # pipeline overhead (~0.35us) is amortized against a meaningful DMA, and
    # all temporaries stay well inside VMEM even on v7x (64 MiB physical).
    tile_b = max(128, min(_round_up(tile_b, 128), _round_up(B, 128)))
    B_pad = _round_up(B, tile_b)
    num_tiles = B_pad // tile_b

    if B_pad != B:
        x = jnp.pad(x, ((0, B_pad - B), (0, 0)))
    x = x.astype(compute_dtype)

    # Weights stream/reside in the compute dtype; biases stay f32 (tiny).
    w1c = w1.astype(compute_dtype)
    w2c = w2.astype(compute_dtype)
    w3c = w3.astype(compute_dtype)
    b1c = b1.reshape(h1, 1).astype(jnp.float32)
    b2c = b2.reshape(h2, 1).astype(jnp.float32)
    b3c = b3.reshape(1, 1).astype(jnp.float32)

    def resident(shape):
        # Whole (tiny) parameter resident in VMEM for every grid step.
        return pl.BlockSpec(shape, lambda i: (0, 0))

    out = pl.pallas_call(
        mlp_kernel,
        out_shape=jax.ShapeDtypeStruct((1, B_pad), jnp.float32),
        grid_spec=pltpu.PrefetchScalarGridSpec(
            num_scalar_prefetch=0,
            grid=(num_tiles,),
            in_specs=[
                pl.BlockSpec((tile_b, D), lambda i: (i, 0)),   # x tile over batch
                resident((h1, D)), resident((h1, 1)),          # layer 1
                resident((h2, h1)), resident((h2, 1)),         # layer 2
                resident((1, h2)), resident((1, 1)),           # head
            ],
            out_specs=pl.BlockSpec((1, tile_b), lambda i: (0, i)),
        ),
        compiler_params=pltpu.CompilerParams(
            dimension_semantics=("parallel",)),
    )(x, w1c, b1c, w2c, b2c, w3c, b3c)

    # (1, B_pad) lane-dense slab -> (B, 1) scores.
    return out[0, :B].reshape(B, 1)


def init_params(key, input_dim, hidden_dims):
    """PyTorch nn.Linear-style init: W (out,in), b (out,), uniform +-1/sqrt(fan_in)."""
    dims = [input_dim] + list(hidden_dims) + [1]
    params = []
    for i in range(len(dims) - 1):
        fan_in, fan_out = dims[i], dims[i + 1]
        key, kw, kb = jax.random.split(key, 3)
        bound = 1.0 / math.sqrt(fan_in)
        w = jax.random.uniform(kw, (fan_out, fan_in), jnp.float32, -bound, bound)
        b = jax.random.uniform(kb, (fan_out,), jnp.float32, -bound, bound)
        params.append((w, b))
    return params


def reference_forward(x, params):
    """Pure-JAX reference matching the PyTorch module (x @ W.T + b)."""
    h = x
    for i, (w, b) in enumerate(params):
        h = jnp.dot(h, w.T, precision=jax.lax.Precision.HIGHEST) + b
        if i < len(params) - 1:
            h = jax.nn.sigmoid(h)
    return h


if __name__ == "__main__":
    key = jax.random.PRNGKey(0)
    input_dim = 32
    hidden_dims = (64, 32)

    k_params, k_x1, k_x2 = jax.random.split(key, 3)
    params = init_params(k_params, input_dim, hidden_dims)

    # Small demo batch: exercises padding (16 -> 128-row tile), single grid step.
    x_small = jax.random.normal(k_x1, (16, input_dim), jnp.float32)
    ref_small = reference_forward(x_small, params)

    out_bf16 = jax.block_until_ready(dyad_ranking_forward(x_small, params))
    out_f32 = jax.block_until_ready(
        dyad_ranking_forward(x_small, params, compute_dtype=jnp.float32))

    assert out_bf16.shape == (16, 1)
    assert out_f32.shape == (16, 1)
    assert jnp.allclose(out_f32, ref_small, atol=1e-4, rtol=1e-4)
    assert jnp.allclose(out_bf16, ref_small, atol=5e-2, rtol=5e-2)

    # Non-multiple batch with multiple tiles: exercises padding + parallel grid.
    x_big = jax.random.normal(k_x2, (300, input_dim), jnp.float32)
    out_big = jax.block_until_ready(
        dyad_ranking_forward(x_big, params, tile_b=128,
                             compute_dtype=jnp.float32))
    ref_big = reference_forward(x_big, params)
    assert out_big.shape == (300, 1)
    assert jnp.allclose(out_big, ref_big, atol=1e-4, rtol=1e-4)

    print("KERNEL_OK")
</pallas_src>

<mosaic_0001>
module attributes {stable_mosaic.version = 11 : i64} {
  func.func @mlp_kernel(%arg0: i32, %arg1: memref<128x32xbf16, #tpu.memory_space<vmem>>, %arg2: memref<64x32xbf16, #tpu.memory_space<vmem>>, %arg3: memref<64x1xf32, #tpu.memory_space<vmem>>, %arg4: memref<32x64xbf16, #tpu.memory_space<vmem>>, %arg5: memref<32x1xf32, #tpu.memory_space<vmem>>, %arg6: memref<1x32xbf16, #tpu.memory_space<vmem>>, %arg7: memref<1x1xf32, #tpu.memory_space<vmem>>, %arg8: memref<1x128xf32, #tpu.memory_space<vmem>>) attributes {dimension_semantics = [#tpu.dimension_semantics<parallel>], iteration_bounds = array<i64: 1>, scalar_prefetch = 0 : i64, scratch_operands = 0 : i64, tpu.core_type = #tpu.core_type<tc>, window_params = [{transform_indices = @transform_0, window_bounds = array<i64: 128, 32>}, {pipeline_mode = #tpu.pipeline_mode<synchronous>, transform_indices = @transform_1, window_bounds = array<i64: 64, 32>}, {pipeline_mode = #tpu.pipeline_mode<synchronous>, transform_indices = @transform_2, window_bounds = array<i64: 64, 1>}, {pipeline_mode = #tpu.pipeline_mode<synchronous>, transform_indices = @transform_3, window_bounds = array<i64: 32, 64>}, {pipeline_mode = #tpu.pipeline_mode<synchronous>, transform_indices = @transform_4, window_bounds = array<i64: 32, 1>}, {pipeline_mode = #tpu.pipeline_mode<synchronous>, transform_indices = @transform_5, window_bounds = array<i64: 1, 32>}, {pipeline_mode = #tpu.pipeline_mode<synchronous>, transform_indices = @transform_6, window_bounds = array<i64: 1, 1>}, {transform_indices = @transform_7, window_bounds = array<i64: 1, 128>}]} {
    %c0 = arith.constant 0 : index
    %c0_0 = arith.constant 0 : index
    %0 = vector.load %arg1[%c0, %c0_0] : memref<128x32xbf16, #tpu.memory_space<vmem>>, vector<128x32xbf16>
    %1 = tpu.transpose %0, [1, 0] : vector<128x32xbf16> -> vector<32x128xbf16>
    %c0_1 = arith.constant 0 : index
    %c0_2 = arith.constant 0 : index
    %2 = vector.load %arg2[%c0_1, %c0_2] : memref<64x32xbf16, #tpu.memory_space<vmem>>, vector<64x32xbf16>
    %cst = arith.constant dense<0.000000e+00> : vector<64x128xf32>
    %3 = tpu.matmul %2, %1, %cst {dimension_numbers = #tpu.dot_dimension_numbers<[1], [0], [0], [1], [0, 0, 1, 1], [], []>} : vector<64x32xbf16>, vector<32x128xbf16>, vector<64x128xf32> -> vector<64x128xf32>
    %c0_3 = arith.constant 0 : index
    %c0_4 = arith.constant 0 : index
    %4 = vector.load %arg3[%c0_3, %c0_4] : memref<64x1xf32, #tpu.memory_space<vmem>>, vector<64x1xf32>
    %5 = vector.broadcast %4 : vector<64x1xf32> to vector<64x128xf32>
    %6 = arith.addf %3, %5 : vector<64x128xf32>
    %cst_5 = arith.constant 5.000000e-01 : f32
    %7 = vector.broadcast %cst_5 : f32 to vector<64x128xf32>
    %8 = arith.mulf %7, %6 : vector<64x128xf32>
    %9 = math.tanh %8 : vector<64x128xf32>
    %cst_6 = arith.constant 5.000000e-01 : f32
    %10 = vector.broadcast %cst_6 : f32 to vector<64x128xf32>
    %11 = arith.mulf %10, %9 : vector<64x128xf32>
    %cst_7 = arith.constant 5.000000e-01 : f32
    %12 = vector.broadcast %cst_7 : f32 to vector<64x128xf32>
    %13 = arith.addf %11, %12 : vector<64x128xf32>
    %14 = arith.truncf %13 : vector<64x128xf32> to vector<64x128xbf16>
    %c0_8 = arith.constant 0 : index
    %c0_9 = arith.constant 0 : index
    %15 = vector.load %arg4[%c0_8, %c0_9] : memref<32x64xbf16, #tpu.memory_space<vmem>>, vector<32x64xbf16>
    %cst_10 = arith.constant dense<0.000000e+00> : vector<32x128xf32>
    %16 = tpu.matmul %15, %14, %cst_10 {dimension_numbers = #tpu.dot_dimension_numbers<[1], [0], [0], [1], [0, 0, 1, 1], [], []>} : vector<32x64xbf16>, vector<64x128xbf16>, vector<32x128xf32> -> vector<32x128xf32>
    %c0_11 = arith.constant 0 : index
    %c0_12 = arith.constant 0 : index
    %17 = vector.load %arg5[%c0_11, %c0_12] : memref<32x1xf32, #tpu.memory_space<vmem>>, vector<32x1xf32>
    %18 = vector.broadcast %17 : vector<32x1xf32> to vector<32x128xf32>
    %19 = arith.addf %16, %18 : vector<32x128xf32>
    %cst_13 = arith.constant 5.000000e-01 : f32
    %20 = vector.broadcast %cst_13 : f32 to vector<32x128xf32>
    %21 = arith.mulf %20, %19 : vector<32x128xf32>
    %22 = math.tanh %21 : vector<32x128xf32>
    %cst_14 = arith.constant 5.000000e-01 : f32
    %23 = vector.broadcast %cst_14 : f32 to vector<32x128xf32>
    %24 = arith.mulf %23, %22 : vector<32x128xf32>
    %cst_15 = arith.constant 5.000000e-01 : f32
    %25 = vector.broadcast %cst_15 : f32 to vector<32x128xf32>
    %26 = arith.addf %24, %25 : vector<32x128xf32>
    %27 = arith.truncf %26 : vector<32x128xf32> to vector<32x128xbf16>
    %c0_16 = arith.constant 0 : index
    %c0_17 = arith.constant 0 : index
    %28 = vector.load %arg6[%c0_16, %c0_17] : memref<1x32xbf16, #tpu.memory_space<vmem>>, vector<1x32xbf16>
    %cst_18 = arith.constant dense<0.000000e+00> : vector<1x128xf32>
    %29 = tpu.matmul %28, %27, %cst_18 {dimension_numbers = #tpu.dot_dimension_numbers<[1], [0], [0], [1], [0, 0, 1, 1], [], []>} : vector<1x32xbf16>, vector<32x128xbf16>, vector<1x128xf32> -> vector<1x128xf32>
    %c0_19 = arith.constant 0 : index
    %c0_20 = arith.constant 0 : index
    %30 = vector.load %arg7[%c0_19, %c0_20] : memref<1x1xf32, #tpu.memory_space<vmem>>, vector<1x1xf32>
    %31 = vector.broadcast %30 : vector<1x1xf32> to vector<1x128xf32>
    %32 = arith.addf %29, %31 : vector<1x128xf32>
    %c0_21 = arith.constant 0 : index
    %c0_22 = arith.constant 0 : index
    %33 = vector.load %arg8[%c0_21, %c0_22] : memref<1x128xf32, #tpu.memory_space<vmem>>, vector<1x128xf32>
    tpu.vector_store %arg8[%c0_21, %c0_22], %32 {strides = array<i32>} : memref<1x128xf32, #tpu.memory_space<vmem>>, vector<1x128xf32>,
    return
  }
  func.func @transform_0(%arg0: i32) -> (i32, i32) {
    %c0_i32 = arith.constant 0 : i32
    %c0_i32_0 = arith.constant 0 : i32
    return %arg0, %c0_i32 : i32, i32
  }
  func.func @transform_1(%arg0: i32) -> (i32, i32) {
    %c0_i32 = arith.constant 0 : i32
    %c0_i32_0 = arith.constant 0 : i32
    %c0_i32_1 = arith.constant 0 : i32
    return %c0_i32, %c0_i32_0 : i32, i32
  }
  func.func @transform_2(%arg0: i32) -> (i32, i32) {
    %c0_i32 = arith.constant 0 : i32
    %c0_i32_0 = arith.constant 0 : i32
    %c0_i32_1 = arith.constant 0 : i32
    return %c0_i32, %c0_i32_0 : i32, i32
  }
  func.func @transform_3(%arg0: i32) -> (i32, i32) {
    %c0_i32 = arith.constant 0 : i32
    %c0_i32_0 = arith.constant 0 : i32
    %c0_i32_1 = arith.constant 0 : i32
    return %c0_i32, %c0_i32_0 : i32, i32
  }
  func.func @transform_4(%arg0: i32) -> (i32, i32) {
    %c0_i32 = arith.constant 0 : i32
    %c0_i32_0 = arith.constant 0 : i32
    %c0_i32_1 = arith.constant 0 : i32
    return %c0_i32, %c0_i32_0 : i32, i32
  }
  func.func @transform_5(%arg0: i32) -> (i32, i32) {
    %c0_i32 = arith.constant 0 : i32
    %c0_i32_0 = arith.constant 0 : i32
    %c0_i32_1 = arith.constant 0 : i32
    return %c0_i32, %c0_i32_0 : i32, i32
  }
  func.func @transform_6(%arg0: i32) -> (i32, i32) {
    %c0_i32 = arith.constant 0 : i32
    %c0_i32_0 = arith.constant 0 : i32
    %c0_i32_1 = arith.constant 0 : i32
    return %c0_i32, %c0_i32_0 : i32, i32
  }
  func.func @transform_7(%arg0: i32) -> (i32, i32) {
    %c0_i32 = arith.constant 0 : i32
    %c0_i32_0 = arith.constant 0 : i32
    return %c0_i32, %arg0 : i32, i32
  }
}

</mosaic_0001>

<llo_original>
// kernel: tpu_custom_call.1
$region0: #{tpu_custom_call.1}
  #allocation0 [shape = 'u32[]', space=smem, size = 0x4, offset = 0x4, fixed_abs, tag = 'smem constant byte address 0x4 - core index']
  #allocation1 [shape = 'u32[72,128]{1,0:T(1,128)}', space=vmem, size = 0x9000, scoped, tag = 'internal scratch']
  #allocation2 [shape = 'f32[1,1]{1,0:T(1,128)S(1)}', space=vmem, size = 0x200, scoped, tag = 'scoped memory for tpu_custom_call.1']
  %s0 = inlined_call_operand.vmem [shape: bf16[128,32], index: 0, kind: input, shape index: {}]
  %s1 = inlined_call_operand.vmem [shape: bf16[64,32], index: 1, kind: input, shape index: {}]
  %s2 = inlined_call_operand.vmem [shape: f32[64,1], index: 2, kind: input, shape index: {}]
  %s3 = inlined_call_operand.vmem [shape: bf16[32,64], index: 3, kind: input, shape index: {}]
  %s4 = inlined_call_operand.vmem [shape: f32[32,1], index: 4, kind: input, shape index: {}]
  %s5 = inlined_call_operand.vmem [shape: bf16[1,32], index: 5, kind: input, shape index: {}]
  %s6 = inlined_call_operand.<no memory space> [shape: f32[1,1], index: 6, kind: input, shape index: {}]
  %s7 = inlined_call_operand.hbm [shape: f32[1,128], index: 7, kind: output, shape index: {}]
  %s8 = sld [smem:[#allocation0]]
  $region38: #{tpu_custom_call.1} parent=0
    _
  %s10 = ssub.s32 1, %s8
  %s11 = scalar_select 0, %s10, %s8
  %v12 = vstv %s6
  %13 = vst [vmem:[#allocation2] sm:$0x1] %v12
  $region1: #{tpu_custom_call.1} parent=0
    #allocation3 [shape = 'u8[512]{0}', space=vmem, size = 0x400, scoped, tag = 'output window, operand 0, single buffered']
    #allocation4 [shape = 's32[1]{0}', space=sflag, size = 0x4, scoped, tag = 'scoped memory for tpu_custom_call.1']
    %14 = vsyncpa [#allocation4], 0
    // Predicated region
    $region2: #{tpu_custom_call.1} parent=1 // pred_check
      _
    $region3: #{tpu_custom_call.1} parent=1 // pred_check_branch
      %16 = sbr.rel (0) target = $region5
    $region4: #{tpu_custom_call.1} parent=1 // pred_region
      _
    $region5: #{tpu_custom_call.1} parent=1 // pred_fallthru
      _
    // Predicated region
    $region6: #{tpu_custom_call.1} parent=1 // pred_check
      _
    $region7: #{tpu_custom_call.1} parent=1 // pred_check_branch
      %18 = sbr.rel (0) target = $region9
    $region8: #{tpu_custom_call.1} parent=1 // pred_region
      _
    $region9: #{tpu_custom_call.1} parent=1 // pred_fallthru
      _
    // Predicated region
    $region10: #{tpu_custom_call.1} parent=1 // pred_check
      _
    $region11: #{tpu_custom_call.1} parent=1 // pred_check_branch
      %20 = sbr.rel (0) target = $region13
    $region12: #{tpu_custom_call.1} parent=1 // pred_region
      _
    $region13: #{tpu_custom_call.1} parent=1 // pred_fallthru
      _
    // Predicated region
    $region14: #{tpu_custom_call.1} parent=1 // pred_check
      _
    $region15: #{tpu_custom_call.1} parent=1 // pred_check_branch
      %22 = sbr.rel (0) target = $region17
    $region16: #{tpu_custom_call.1} parent=1 // pred_region
      _
    $region17: #{tpu_custom_call.1} parent=1 // pred_fallthru
      _
    // Predicated region
    $region18: #{tpu_custom_call.1} parent=1 // pred_check
      _
    $region19: #{tpu_custom_call.1} parent=1 // pred_check_branch
      %24 = sbr.rel (0) target = $region21
    $region20: #{tpu_custom_call.1} parent=1 // pred_region
      _
    $region21: #{tpu_custom_call.1} parent=1 // pred_fallthru
      _
    // Predicated region
    $region22: #{tpu_custom_call.1} parent=1 // pred_check
      _
    $region23: #{tpu_custom_call.1} parent=1 // pred_check_branch
      %26 = sbr.rel (0) target = $region25
    $region24: #{tpu_custom_call.1} parent=1 // pred_region
      _
    $region25: #{tpu_custom_call.1} parent=1 // pred_fallthru
      _
    // Predicated region
    $region26: #{tpu_custom_call.1} parent=1 // pred_check
      _
    $region27: #{tpu_custom_call.1} parent=1 // pred_check_branch
      %28 = sbr.rel (0) target = $region29
    $region28: #{tpu_custom_call.1} parent=1 // pred_region
      _
    $region29: #{tpu_custom_call.1} parent=1 // pred_fallthru
      _
    %v30 = vld [vmem:[%s0] sm:$0xf]
    %v31 = vld [vmem:[%s0 + $0x4] sm:$0xf]
    %v32 = vld [vmem:[%s0 + $0x8] sm:$0xf]
    %v33 = vld [vmem:[%s0 + $0xc] sm:$0xf]
    %v34 = vld [vmem:[%s0 + $0x10] sm:$0xf]
    %v35 = vld [vmem:[%s0 + $0x14] sm:$0xf]
    %v36 = vld [vmem:[%s0 + $0x18] sm:$0xf]
    %v37 = vld [vmem:[%s0 + $0x1c] sm:$0xf]
    %v38 = vld [vmem:[%s0 + $0x20] sm:$0xf]
    %v39 = vld [vmem:[%s0 + $0x24] sm:$0xf]
    %v40 = vld [vmem:[%s0 + $0x28] sm:$0xf]
    %v41 = vld [vmem:[%s0 + $0x2c] sm:$0xf]
    %v42 = vld [vmem:[%s0 + $0x30] sm:$0xf]
    %v43 = vld [vmem:[%s0 + $0x34] sm:$0xf]
    %v44 = vld [vmem:[%s0 + $0x38] sm:$0xf]
    %v45 = vld [vmem:[%s0 + $0x3c] sm:$0xf]
    %v46 = vld [vmem:[%s1] sm:$0xf]
    %v47 = vld [vmem:[%s1 + $0x4] sm:$0xf]
    %v48 = vld [vmem:[%s1 + $0x8] sm:$0xf]
    %v49 = vld [vmem:[%s1 + $0xc] sm:$0xf]
    %v50 = vld [vmem:[%s1 + $0x10] sm:$0xf]
    %v51 = vld [vmem:[%s1 + $0x14] sm:$0xf]
    %v52 = vld [vmem:[%s1 + $0x18] sm:$0xf]
    %v53 = vld [vmem:[%s1 + $0x1c] sm:$0xf]
    %v54 = vld [vmem:[%s2] sm:$0xff]
    %v55 = vld [vmem:[%s2 + $0x8] sm:$0xff]
    %v56 = vld [vmem:[%s2 + $0x10] sm:$0xff]
    %v57 = vld [vmem:[%s2 + $0x18] sm:$0xff]
    %v58 = vld [vmem:[%s2 + $0x20] sm:$0xff]
    %v59 = vld [vmem:[%s2 + $0x28] sm:$0xff]
    %v60 = vld [vmem:[%s2 + $0x30] sm:$0xff]
    %v61 = vld [vmem:[%s2 + $0x38] sm:$0xff]
    %63 = vset.pattern.permute.xlu0 0
    %64 = vperm.xlu0 %63, %v54
    %v65 = vpop.permute.xlu0 %64
    %68 = vset.pattern.permute.xlu0 0
    %69 = vperm.xlu0 %68, %v55
    %v70 = vpop.permute.xlu0 %69
    %73 = vset.pattern.permute.xlu0 0
    %74 = vperm.xlu0 %73, %v56
    %v75 = vpop.permute.xlu0 %74
    %78 = vset.pattern.permute.xlu0 0
    %79 = vperm.xlu0 %78, %v57
    %v80 = vpop.permute.xlu0 %79
    %83 = vset.pattern.permute.xlu0 0
    %84 = vperm.xlu0 %83, %v58
    %v85 = vpop.permute.xlu0 %84
    %88 = vset.pattern.permute.xlu0 0
    %89 = vperm.xlu0 %88, %v59
    %v90 = vpop.permute.xlu0 %89
    %93 = vset.pattern.permute.xlu0 0
    %94 = vperm.xlu0 %93, %v60
    %v95 = vpop.permute.xlu0 %94
    %98 = vset.pattern.permute.xlu0 0
    %99 = vperm.xlu0 %98, %v61
    %v100 = vpop.permute.xlu0 %99
    %v110 = vunpack.c.l.b16 %v46
    %v111 = vunpack.c.l.b16 %v47
    %v112 = vunpack.c.l.b16 %v48
    %v113 = vunpack.c.l.b16 %v49
    %v114 = vunpack.c.l.b16 %v50
    %v115 = vunpack.c.l.b16 %v51
    %v116 = vunpack.c.l.b16 %v52
    %v117 = vunpack.c.l.b16 %v53
    %v118 = vpack.c.b16 %v111, %v110
    %v119 = vpack.c.b16 %v113, %v112
    %v120 = vpack.c.b16 %v115, %v114
    %v121 = vpack.c.b16 %v117, %v116
    %v138 = vunpack.c.l.b16 %v30
    %v139 = vunpack.c.l.b16 %v31
    %v140 = vunpack.c.l.b16 %v32
    %v141 = vunpack.c.l.b16 %v33
    %v142 = vunpack.c.l.b16 %v34
    %v143 = vunpack.c.l.b16 %v35
    %v144 = vunpack.c.l.b16 %v36
    %v145 = vunpack.c.l.b16 %v37
    %v146 = vunpack.c.l.b16 %v38
    %v147 = vunpack.c.l.b16 %v39
    %v148 = vunpack.c.l.b16 %v40
    %v149 = vunpack.c.l.b16 %v41
    %v150 = vunpack.c.l.b16 %v42
    %v151 = vunpack.c.l.b16 %v43
    %v152 = vunpack.c.l.b16 %v44
    %v153 = vunpack.c.l.b16 %v45
    %v154 = vpack.c.b16 %v139, %v138
    %v155 = vpack.c.b16 %v141, %v140
    %v156 = vpack.c.b16 %v143, %v142
    %v157 = vpack.c.b16 %v145, %v144
    %v158 = vpack.c.b16 %v147, %v146
    %v159 = vpack.c.b16 %v149, %v148
    %v160 = vpack.c.b16 %v151, %v150
    %v161 = vpack.c.b16 %v153, %v152
    %vm162 = vcmask 261120
    %v164 = vsel %vm162, %v118, 0
    %v167 = vsel %vm162, %v119, 0
    %v170 = vsel %vm162, %v120, 0
    %v173 = vsel %vm162, %v121, 0
    %v176 = vsel %vm162, %v154, 0
    %v179 = vsel %vm162, %v155, 0
    %v182 = vsel %vm162, %v156, 0
    %v185 = vsel %vm162, %v157, 0
    %v188 = vsel %vm162, %v158, 0
    %v191 = vsel %vm162, %v159, 0
    %v194 = vsel %vm162, %v160, 0
    %v197 = vsel %vm162, %v161, 0
    %199 = vmatpush.bf16.xpose.msra.mxu0 %v197
    %200 = vmatpush.bf16.xpose.msra.mxu0 %v194
    %201 = vmatpush.bf16.xpose.msra.mxu0 %v191
    %202 = vmatpush.bf16.xpose.msra.mxu0 %v188
    %203 = vmatpush.bf16.xpose.msra.mxu0 %v185
    %204 = vmatpush.bf16.xpose.msra.mxu0 %v182
    %205 = vmatpush.bf16.xpose.msra.mxu0 %v179
    %206 = vmatpush.bf16.xpose.msra.mxu0 %v176
    %207 = vmatmul.bf16.gmra.mxu0 %v164
    %v208 = vpop.f32.mrf.mxu0
    %v209 = vadd.f32 %v65, %v208
    %v210 = vpop.f32.mrf.mxu0
    %v211 = vadd.f32 %v70, %v210
    %212 = vmatmul.bf16.gmra.mxu0 %v167
    %v213 = vpop.f32.mrf.mxu0
    %v214 = vadd.f32 %v75, %v213
    %v215 = vpop.f32.mrf.mxu0
    %v216 = vadd.f32 %v80, %v215
    %217 = vmatmul.bf16.gmra.mxu0 %v170
    %v218 = vpop.f32.mrf.mxu0
    %v219 = vadd.f32 %v85, %v218
    %v220 = vpop.f32.mrf.mxu0
    %v221 = vadd.f32 %v90, %v220
    %222 = vmatmul.bf16.gmra.mxu0 %v173
    %v223 = vpop.f32.mrf.mxu0
    %v224 = vadd.f32 %v95, %v223
    %v225 = vpop.f32.mrf.mxu0
    %v226 = vadd.f32 %v100, %v225
    %227 = vdwg.mxu0
    %v228 = vmul.f32 %v209, 0.5
    %v229 = vmul.f32 %v211, 0.5
    %v230 = vmul.f32 %v214, 0.5
    %v231 = vmul.f32 %v216, 0.5
    %v232 = vmul.f32 %v219, 0.5
    %v233 = vmul.f32 %v221, 0.5
    %v234 = vmul.f32 %v224, 0.5
    %v235 = vmul.f32 %v226, 0.5
    %v236 = vtanh.pop %v228
    %v237 = vtanh.pop %v229
    %v238 = vtanh.pop %v230
    %v239 = vtanh.pop %v231
    %v240 = vtanh.pop %v232
    %v241 = vtanh.pop %v233
    %v242 = vtanh.pop %v234
    %v243 = vtanh.pop %v235
    %v244 = vmul.f32 %v236, 0.5
    %v245 = vmul.f32 %v237, 0.5
    %v246 = vmul.f32 %v238, 0.5
    %v247 = vmul.f32 %v239, 0.5
    %v248 = vmul.f32 %v240, 0.5
    %v249 = vmul.f32 %v241, 0.5
    %v250 = vmul.f32 %v242, 0.5
    %v251 = vmul.f32 %v243, 0.5
    %v252 = vadd.f32 %v244, 0.5
    %v253 = vadd.f32 %v245, 0.5
    %v254 = vadd.f32 %v246, 0.5
    %v255 = vadd.f32 %v247, 0.5
    %v256 = vadd.f32 %v248, 0.5
    %v257 = vadd.f32 %v249, 0.5
    %v258 = vadd.f32 %v250, 0.5
    %v259 = vadd.f32 %v251, 0.5
    %v260 = vpack.c.bf16 %v253, %v252
    %v261 = vpack.c.bf16 %v255, %v254
    %v262 = vpack.c.bf16 %v257, %v256
    %v263 = vpack.c.bf16 %v259, %v258
    %v264 = vld [vmem:[%s3] sm:$0xf]
    %v265 = vld [vmem:[%s3 + $0x4] sm:$0xf]
    %v266 = vld [vmem:[%s3 + $0x8] sm:$0xf]
    %v267 = vld [vmem:[%s3 + $0xc] sm:$0xf]
    %v268 = vld [vmem:[%s4] sm:$0xff]
    %v269 = vld [vmem:[%s4 + $0x8] sm:$0xff]
    %v270 = vld [vmem:[%s4 + $0x10] sm:$0xff]
    %v271 = vld [vmem:[%s4 + $0x18] sm:$0xff]
    %273 = vset.pattern.permute.xlu0 0
    %274 = vperm.xlu0 %273, %v268
    %v275 = vpop.permute.xlu0 %274
    %278 = vset.pattern.permute.xlu0 0
    %279 = vperm.xlu0 %278, %v269
    %v280 = vpop.permute.xlu0 %279
    %283 = vset.pattern.permute.xlu0 0
    %284 = vperm.xlu0 %283, %v270
    %v285 = vpop.permute.xlu0 %284
    %288 = vset.pattern.permute.xlu0 0
    %289 = vperm.xlu0 %288, %v271
    %v290 = vpop.permute.xlu0 %289
    %v296 = vunpack.c.l.b16 %v264
    %v297 = vunpack.c.l.b16 %v265
    %v298 = vunpack.c.l.b16 %v266
    %v299 = vunpack.c.l.b16 %v267
    %v300 = vpack.c.b16 %v297, %v296
    %v301 = vpack.c.b16 %v299, %v298
    %vm302 = vcmask 523264
    %v304 = vsel %vm302, %v300, 0
    %v307 = vsel %vm302, %v301, 0
    %309 = vmatpush.bf16.msra.mxu0 0
    %310 = vmatpush.bf16.msra.mxu0 0
    %311 = vmatpush.bf16.msra.mxu0 0
    %312 = vmatpush.bf16.msra.mxu0 0
    %313 = vmatpush.bf16.msra.mxu0 %v263
    %314 = vmatpush.bf16.msra.mxu0 %v262
    %315 = vmatpush.bf16.msra.mxu0 %v261
    %316 = vmatpush.bf16.msra.mxu0 %v260
    %317 = vmatmul.bf16.gmra.mxu0 %v304
    %v318 = vpop.f32.mrf.mxu0
    %v319 = vadd.f32 %v275, %v318
    %v320 = vpop.f32.mrf.mxu0
    %v321 = vadd.f32 %v280, %v320
    %322 = vmatmul.bf16.gmra.mxu0 %v307
    %v323 = vpop.f32.mrf.mxu0
    %v324 = vadd.f32 %v285, %v323
    %v325 = vpop.f32.mrf.mxu0
    %v326 = vadd.f32 %v290, %v325
    %327 = vdwg.mxu0
    %v328 = vmul.f32 %v319, 0.5
    %v329 = vmul.f32 %v321, 0.5
    %v330 = vmul.f32 %v324, 0.5
    %v331 = vmul.f32 %v326, 0.5
    %v332 = vtanh.pop %v328
    %v333 = vtanh.pop %v329
    %v334 = vtanh.pop %v330
    %v335 = vtanh.pop %v331
    %v336 = vmul.f32 %v332, 0.5
    %v337 = vmul.f32 %v333, 0.5
    %v338 = vmul.f32 %v334, 0.5
    %v339 = vmul.f32 %v335, 0.5
    %v340 = vadd.f32 %v336, 0.5
    %v341 = vadd.f32 %v337, 0.5
    %v342 = vadd.f32 %v338, 0.5
    %v343 = vadd.f32 %v339, 0.5
    %v344 = vpack.c.bf16 %v341, %v340
    %v345 = vpack.c.bf16 %v343, %v342
    %v346 = vld [vmem:[%s5] sm:$0x1]
    %v347 = vld [vmem:[#allocation2] sm:$0x1]
    %349 = vset.pattern.permute.xlu0 0
    %350 = vperm.xlu0 %349, %v347
    %v351 = vpop.permute.xlu0 %350
    %v353 = vperm.slane %v351, 0
    %v355 = vsel %vm162, %v346, 0
    %357 = vmatpush.bf16.msra.mxu0 0
    %358 = vmatpush.bf16.msra.mxu0 0
    %359 = vmatpush.bf16.msra.mxu0 0
    %360 = vmatpush.bf16.msra.mxu0 0
    %361 = vmatpush.bf16.msra.mxu0 0
    %362 = vmatpush.bf16.msra.mxu0 0
    %363 = vmatpush.bf16.msra.mxu0 %v345
    %364 = vmatpush.bf16.msra.mxu0 %v344
    %365 = vmatmul.bf16.gmra.mxu0 %v355
    %v366 = vpop.f32.mrf.mxu0
    %v367 = vadd.f32 %v353, %v366
    %v368 = vpop.f32.mrf.mxu0
    %369 = vdwg.mxu0
    %370 = vst [vmem:[#allocation3] sm:$0x1] %v367
    // Predicated region
    $region30: #{tpu_custom_call.1} parent=1 // pred_check
      _
    $region31: #{tpu_custom_call.1} parent=1 // pred_check_branch
      %372 = sbr.rel (0) target = $region33
    $region32: #{tpu_custom_call.1} parent=1 // pred_region
      %374 = vsyncadd [#allocation4], 0
      %s376 = sshll.u32 [#allocation3], 4
      %s377 = int_to_ptr.vmem [resolvable:$true] %s376
      %s378 = sshll.u32 %s7, 4
      %s379 = int_to_ptr.hbm [resolvable:$true] %s378
      %381 = dma.vmem_to_hbm [thread:$0]  %s377, 16, %s379, [#allocation4]
    $region33: #{tpu_custom_call.1} parent=1 // pred_fallthru
      _
    // Predicated region
    $region34: #{tpu_custom_call.1} parent=1 // pred_check
      _
    $region35: #{tpu_custom_call.1} parent=1 // pred_check_branch
      %383 = sbr.rel (0) target = $region37
    $region36: #{tpu_custom_call.1} parent=1 // pred_region
      %385 = dma.done [#allocation4], 16
    $region37: #{tpu_custom_call.1} parent=1 // pred_fallthru
      _
    %386 = vsyncpa [#allocation4], 1

</llo_original>
